<compile_context>
chip_gen: v7x
topology: tpu7x:2x2x1
jax: 0.10.0
libtpu: 0.0.40
codegen_flags: <defaults>
</compile_context>

<pallas_src>
import functools
import math

import jax
import jax.numpy as jnp
from jax.experimental import pallas as pl
from jax.experimental.pallas import tpu as pltpu


_LN_EPS = 1e-5
_SUBLANE = 8
_LANE = 128


# ---------------------------------------------------------------------------
# Chip-aware VMEM budget & tile selection
# ---------------------------------------------------------------------------
@functools.lru_cache(maxsize=None)
def _vmem_budget() -> int:
    """~75% of the chip's VMEM capacity (headroom for Mosaic scratch)."""
    cap = 64 * 1024 * 1024                      # conservative default (v7x per-TC)
    try:
        info = pltpu.get_tpu_info()
        cap = int(getattr(info, "vmem_capacity_bytes", cap) or cap)
    except Exception:
        pass
    return (cap * 3) // 4


def _divisor_tile(n: int, cap: int, step: int) -> int:
    """Largest multiple of `step` that divides n and is <= cap (else n)."""
    if n % step != 0 or n <= step:
        return n
    t = min(n, max(step, (min(cap, n) // step) * step))
    while t > step and n % t != 0:
        t -= step
    return t if n % t == 0 else n


def _cap_for_steps(m: int, cap: int) -> int:
    """Prefer >=4 (else >=2) row grid steps so the pipeline can overlap."""
    for steps in (4, 2):
        if m % _SUBLANE == 0 and m // steps >= _SUBLANE:
            return min(cap, max(_SUBLANE, m // steps))
    return cap


def _matmul_tiles(m: int, k: int, n: int, extra_out_like: int = 0):
    """Pick (tm, tn) so the double-buffered working set fits the VMEM budget."""
    budget = _vmem_budget()
    tn = n
    w_bytes = 2 * k * n * 2                               # dbl-buffered bf16 weight
    if w_bytes > budget // 2 and n % _LANE == 0:          # tile N only when needed
        tn = _divisor_tile(n, max(_LANE, (budget // 2) // max(4 * k, 1)), _LANE)
        w_bytes = 2 * k * tn * 2
    row_bytes = 2 * 4 * (k + tn * (1 + extra_out_like))   # dbl-buffered f32 act blocks
    cap_rows = max(_SUBLANE, (budget - w_bytes) // max(row_bytes, 1))
    cap_rows = min(cap_rows, 2048)
    cap_rows = _cap_for_steps(m, cap_rows)
    return _divisor_tile(m, cap_rows, _SUBLANE), tn


def _row_tile(m: int, per_row_bytes: int) -> int:
    budget = _vmem_budget()
    cap = min(2048, max(_SUBLANE, budget // max(per_row_bytes, 1)))
    return _divisor_tile(m, _cap_for_steps(m, cap), _SUBLANE)


def _compiler_params(semantics):
    return pltpu.CompilerParams(dimension_semantics=semantics,
                                vmem_limit_bytes=_vmem_budget())


# ---------------------------------------------------------------------------
# Kernels
# ---------------------------------------------------------------------------
def _ln_matmul_kernel(x_ref, w_ref, wb_ref, o_ref, *, eps, relu):
    """out = act( LN_core(x) @ W' + b' ) — LN affine already folded into W'/b'."""
    x = x_ref[...].astype(jnp.float32)                       # (tm, K)
    mu = jnp.mean(x, axis=-1, keepdims=True)
    var = jnp.mean(jnp.square(x - mu), axis=-1, keepdims=True)
    xn = (x - mu) * jax.lax.rsqrt(var + eps)
    # bf16 MXU operands, f32 accumulation.
    y = jnp.dot(xn.astype(w_ref.dtype), w_ref[...],
                preferred_element_type=jnp.float32) + wb_ref[...]
    if relu:
        y = jnp.maximum(y, 0.0)
    o_ref[...] = y.astype(o_ref.dtype)


def _matmul_residual_kernel(x_ref, w_ref, wb_ref, res_ref, o_ref):
    """out = x @ W + bias + residual (bf16 MXU operands, f32 accumulation)."""
    y = jnp.dot(x_ref[...].astype(w_ref.dtype), w_ref[...],
                preferred_element_type=jnp.float32)
    o_ref[...] = (y + wb_ref[...] + res_ref[...]).astype(o_ref.dtype)


def _layernorm_kernel(x_ref, g_ref, b_ref, o_ref, *, eps):
    x = x_ref[...].astype(jnp.float32)
    mu = jnp.mean(x, axis=-1, keepdims=True)
    var = jnp.mean(jnp.square(x - mu), axis=-1, keepdims=True)
    o_ref[...] = ((x - mu) * jax.lax.rsqrt(var + eps) * g_ref[...]
                  + b_ref[...]).astype(o_ref.dtype)


def _attention_kernel(qkv_ref, bias_ref, o_ref, *, num_heads, head_dim,
                      model_dim, scale):
    """Per-batch multi-head attention straight off the fused qkv slab.

    qkv_ref: (S, 3D) slab for one batch (q | k | v, head-major within each D).
    o_ref  : (S, D) lane-dense output slab for the same batch.
    Heads are a static unrolled loop over lane sub-slices of the VMEM tile, so
    the HBM store per grid step is the full D-wide (lane-dense) block.
    """
    D, hd = model_dim, head_dim
    bias = bias_ref[0]                                       # (1, S) key bias, f32
    for h in range(num_heads):
        q = (qkv_ref[:, h * hd:(h + 1) * hd].astype(jnp.float32) * scale
             ).astype(jnp.bfloat16)                          # (S, hd)
        k = qkv_ref[:, D + h * hd:D + (h + 1) * hd].astype(jnp.bfloat16)
        v = qkv_ref[:, 2 * D + h * hd:2 * D + (h + 1) * hd].astype(jnp.bfloat16)
        s = jax.lax.dot_general(q, k, (((1,), (1,)), ((), ())),
                                preferred_element_type=jnp.float32)   # (S, S)
        s = s + bias
        m = jnp.max(s, axis=-1, keepdims=True)
        p = jnp.exp(s - m)
        l = jnp.sum(p, axis=-1, keepdims=True)
        o = jnp.dot(p.astype(jnp.bfloat16), v,
                    preferred_element_type=jnp.float32)               # (S, hd)
        o = o * pl.reciprocal(l, approx=True)                # EUP reciprocal
        o_ref[:, h * hd:(h + 1) * hd] = o.astype(o_ref.dtype)


# ---------------------------------------------------------------------------
# pallas_call wrappers
# ---------------------------------------------------------------------------
def _ln_matmul(x, w, wb, *, relu):
    M, K = x.shape
    N = w.shape[1]
    tm, tn = _matmul_tiles(M, K, N, extra_out_like=0)
    return pl.pallas_call(
        functools.partial(_ln_matmul_kernel, eps=_LN_EPS, relu=relu),
        grid=(M // tm, N // tn),
        in_specs=[pl.BlockSpec((tm, K), lambda i, j: (i, 0)),
                  pl.BlockSpec((K, tn), lambda i, j: (0, j)),
                  pl.BlockSpec((1, tn), lambda i, j: (0, j))],
        out_specs=pl.BlockSpec((tm, tn), lambda i, j: (i, j)),
        out_shape=jax.ShapeDtypeStruct((M, N), x.dtype),
        compiler_params=_compiler_params(("parallel", "parallel")),
    )(x, w, wb.reshape(1, N))


def _matmul_residual(x, w, wb, res):
    M, K = x.shape
    N = w.shape[1]
    tm, tn = _matmul_tiles(M, K, N, extra_out_like=1)
    return pl.pallas_call(
        _matmul_residual_kernel,
        grid=(M // tm, N // tn),
        in_specs=[pl.BlockSpec((tm, K), lambda i, j: (i, 0)),
                  pl.BlockSpec((K, tn), lambda i, j: (0, j)),
                  pl.BlockSpec((1, tn), lambda i, j: (0, j)),
                  pl.BlockSpec((tm, tn), lambda i, j: (i, j))],
        out_specs=pl.BlockSpec((tm, tn), lambda i, j: (i, j)),
        out_shape=jax.ShapeDtypeStruct((M, N), x.dtype),
        compiler_params=_compiler_params(("parallel", "parallel")),
    )(x, w, wb.reshape(1, N), res)


def _layernorm(x, g, b):
    M, D = x.shape
    tm = _row_tile(M, per_row_bytes=16 * D)
    return pl.pallas_call(
        functools.partial(_layernorm_kernel, eps=_LN_EPS),
        grid=(M // tm,),
        in_specs=[pl.BlockSpec((tm, D), lambda i: (i, 0)),
                  pl.BlockSpec((1, D), lambda i: (0, 0)),
                  pl.BlockSpec((1, D), lambda i: (0, 0))],
        out_specs=pl.BlockSpec((tm, D), lambda i: (i, 0)),
        out_shape=jax.ShapeDtypeStruct((M, D), x.dtype),
        compiler_params=_compiler_params(("parallel",)),
    )(x, g.reshape(1, D), b.reshape(1, D))


def _attention(qkv, key_bias, *, B, S, H, D):
    hd = D // H
    scale = 1.0 / math.sqrt(hd)
    return pl.pallas_call(
        functools.partial(_attention_kernel, num_heads=H, head_dim=hd,
                          model_dim=D, scale=scale),
        grid=(B,),
        in_specs=[pl.BlockSpec((S, 3 * D), lambda b: (b, 0)),
                  pl.BlockSpec((1, 1, S), lambda b: (b, 0, 0))],
        out_specs=pl.BlockSpec((S, D), lambda b: (b, 0)),
        out_shape=jax.ShapeDtypeStruct((B * S, D), qkv.dtype),
        compiler_params=_compiler_params(("parallel",)),
    )(qkv, key_bias)


# ---------------------------------------------------------------------------
# Encoder forward (eval mode: dropout == identity)
# ---------------------------------------------------------------------------
def _encoder_layer(x2d, p, key_bias, *, B, S, H):
    D = x2d.shape[1]

    # --- self-attention block (pre-norm) ---
    residual = x2d
    qkv = _ln_matmul(x2d, p["w_qkv"], p["b_qkv"], relu=False)   # (B*S, 3D)
    attn = _attention(qkv, key_bias, B=B, S=S, H=H, D=D)        # (B*S, D)
    x2d = _matmul_residual(attn, p["w_o"], p["b_o"], residual)  # out-proj + residual

    # --- feed-forward block (pre-norm) ---
    residual = x2d
    h = _ln_matmul(x2d, p["w_fc1"], p["b_fc1"], relu=True)
    x2d = _matmul_residual(h, p["w_fc2"], p["b_fc2"], residual)
    return x2d


def transformer_encoder(x, params, num_heads, encoder_padding_mask=None):
    """x: (S, B, D) fairseq layout.  Returns (S, B, D).  Use prepare_params()."""
    S, B, D = x.shape
    x2d = jnp.transpose(x, (1, 0, 2)).reshape(B * S, D)         # batch-major slab
    if encoder_padding_mask is None:
        key_bias = jnp.zeros((B, 1, S), jnp.float32)
    else:
        key_bias = jnp.where(encoder_padding_mask[:, None, :],
                             jnp.float32(-1e9), jnp.float32(0.0)).astype(jnp.float32)
    for p in params["layers"]:
        x2d = _encoder_layer(x2d, p, key_bias, B=B, S=S, H=num_heads)
    x2d = _layernorm(x2d, params["lnf_g"], params["lnf_b"])
    return x2d.reshape(B, S, D).transpose(1, 0, 2)


# ---------------------------------------------------------------------------
# Parameters
# ---------------------------------------------------------------------------
def init_params(key, dim, ff_dim, num_layer):
    """Module-style f32 parameters (same structure as the PyTorch layer)."""
    def dense(k, fi, fo):
        return jax.random.normal(k, (fi, fo), jnp.float32) / math.sqrt(fi)

    layers = []
    for _ in range(num_layer):
        key, *ks = jax.random.split(key, 13)
        ks = iter(ks)
        layers.append(dict(
            ln1_g=1.0 + 0.1 * jax.random.normal(next(ks), (dim,), jnp.float32),
            ln1_b=0.1 * jax.random.normal(next(ks), (dim,), jnp.float32),
            w_qkv=dense(next(ks), dim, 3 * dim),
            b_qkv=0.02 * jax.random.normal(next(ks), (3 * dim,), jnp.float32),
            w_o=dense(next(ks), dim, dim),
            b_o=0.02 * jax.random.normal(next(ks), (dim,), jnp.float32),
            ln2_g=1.0 + 0.1 * jax.random.normal(next(ks), (dim,), jnp.float32),
            ln2_b=0.1 * jax.random.normal(next(ks), (dim,), jnp.float32),
            w_fc1=dense(next(ks), dim, ff_dim),
            b_fc1=0.02 * jax.random.normal(next(ks), (ff_dim,), jnp.float32),
            w_fc2=dense(next(ks), ff_dim, dim),
            b_fc2=0.02 * jax.random.normal(next(ks), (dim,), jnp.float32),
        ))
    key, kg, kb = jax.random.split(key, 3)
    return dict(layers=layers,
                lnf_g=1.0 + 0.1 * jax.random.normal(kg, (dim,), jnp.float32),
                lnf_b=0.1 * jax.random.normal(kb, (dim,), jnp.float32))


def prepare_params(params):
    """Fold each pre-norm LN affine into the following projection (W'=g*W,
    b'=b@W+wb; mathematically identical) and cast matmul weights to bf16
    (native MXU dtype, halves weight DMA).  Biases and LN params stay f32."""
    layers = []
    for p in params["layers"]:
        w_qkv = p["ln1_g"][:, None] * p["w_qkv"]
        b_qkv = p["ln1_b"] @ p["w_qkv"] + p["b_qkv"]
        w_fc1 = p["ln2_g"][:, None] * p["w_fc1"]
        b_fc1 = p["ln2_b"] @ p["w_fc1"] + p["b_fc1"]
        layers.append(dict(
            w_qkv=w_qkv.astype(jnp.bfloat16), b_qkv=b_qkv,
            w_o=p["w_o"].astype(jnp.bfloat16), b_o=p["b_o"],
            w_fc1=w_fc1.astype(jnp.bfloat16), b_fc1=b_fc1,
            w_fc2=p["w_fc2"].astype(jnp.bfloat16), b_fc2=p["b_fc2"],
        ))
    return dict(layers=layers, lnf_g=params["lnf_g"], lnf_b=params["lnf_b"])


# ---------------------------------------------------------------------------
# Pure-JAX reference (same math / same mixed-precision recipe, no Pallas)
# ---------------------------------------------------------------------------
def _reference(x, params, num_heads, encoder_padding_mask=None):
    S, B, D = x.shape
    H = num_heads
    hd = D // H
    scale = 1.0 / math.sqrt(hd)

    def ln_core(t):
        mu = jnp.mean(t, -1, keepdims=True)
        var = jnp.mean(jnp.square(t - mu), -1, keepdims=True)
        return (t - mu) * jax.lax.rsqrt(var + _LN_EPS)

    def proj(t, w, b):                       # bf16 MXU operands, f32 accumulate
        return jnp.dot(t.astype(jnp.bfloat16), w,
                       preferred_element_type=jnp.float32) + b

    xb = jnp.transpose(x, (1, 0, 2))         # (B, S, D)
    if encoder_padding_mask is None:
        bias = jnp.zeros((B, 1, 1, S), jnp.float32)
    else:
        bias = jnp.where(encoder_padding_mask[:, None, None, :],
                         -1e9, 0.0).astype(jnp.float32)

    for p in params["layers"]:
        residual = xb
        qkv = proj(ln_core(xb), p["w_qkv"], p["b_qkv"])
        q, k, v = jnp.split(qkv, 3, axis=-1)
        q = (q * scale).reshape(B, S, H, hd).transpose(0, 2, 1, 3)
        k = k.reshape(B, S, H, hd).transpose(0, 2, 1, 3)
        v = v.reshape(B, S, H, hd).transpose(0, 2, 1, 3)
        s = jnp.einsum("bhqd,bhkd->bhqk",
                       q.astype(jnp.bfloat16), k.astype(jnp.bfloat16),
                       preferred_element_type=jnp.float32) + bias
        m = jnp.max(s, -1, keepdims=True)
        pexp = jnp.exp(s - m)
        l = jnp.sum(pexp, -1, keepdims=True)
        o = jnp.einsum("bhqk,bhkd->bhqd",
                       pexp.astype(jnp.bfloat16), v.astype(jnp.bfloat16),
                       preferred_element_type=jnp.float32) / l
        o = o.transpose(0, 2, 1, 3).reshape(B, S, D)
        xb = residual + proj(o, p["w_o"], p["b_o"])
        residual = xb
        h = jnp.maximum(proj(ln_core(xb), p["w_fc1"], p["b_fc1"]), 0.0)
        xb = residual + proj(h, p["w_fc2"], p["b_fc2"])

    mu = jnp.mean(xb, -1, keepdims=True)
    var = jnp.mean(jnp.square(xb - mu), -1, keepdims=True)
    xb = (xb - mu) * jax.lax.rsqrt(var + _LN_EPS) * params["lnf_g"] + params["lnf_b"]
    return jnp.transpose(xb, (1, 0, 2))


# ---------------------------------------------------------------------------
# Demo / self-test
# ---------------------------------------------------------------------------
if __name__ == "__main__":
    S, B, D, FF, H, L = 8, 2, 32, 64, 4, 2   # seq, batch, dim, ff_dim, heads, layers

    key = jax.random.PRNGKey(0)
    kx, kp = jax.random.split(key)
    x = jax.random.normal(kx, (S, B, D), dtype=jnp.float32)
    params = prepare_params(init_params(kp, D, FF, L))

    # fairseq-style key padding mask: True = padded (pad the tail of batch 1)
    pad_mask = jnp.zeros((B, S), dtype=bool).at[1, S - 2:].set(True)

    out = jax.block_until_ready(transformer_encoder(x, params, H, pad_mask))
    ref = _reference(x, params, H, pad_mask)
    assert out.shape == (S, B, D) and out.dtype == x.dtype
    err = float(jnp.max(jnp.abs(out - ref)))
    assert err < 2e-2, err

    # mask-free path
    out2 = jax.block_until_ready(transformer_encoder(x, params, H, None))
    ref2 = _reference(x, params, H, None)
    err2 = float(jnp.max(jnp.abs(out2 - ref2)))
    assert err2 < 2e-2, err2

    print("KERNEL_OK")
</pallas_src>

<mosaic_0001>
module attributes {stable_mosaic.version = 11 : i64} {
  func.func @_ln_matmul_kernel(%arg0: i32, %arg1: i32, %arg2: memref<8x32xf32, #tpu.memory_space<vmem>>, %arg3: memref<32x96xbf16, #tpu.memory_space<vmem>>, %arg4: memref<1x96xf32, #tpu.memory_space<vmem>>, %arg5: memref<8x96xf32, #tpu.memory_space<vmem>>) attributes {dimension_semantics = [#tpu.dimension_semantics<parallel>, #tpu.dimension_semantics<parallel>], iteration_bounds = array<i64: 2, 1>, scalar_prefetch = 0 : i64, scratch_operands = 0 : i64, tpu.core_type = #tpu.core_type<tc>, window_params = [{transform_indices = @transform_0, window_bounds = array<i64: 8, 32>}, {transform_indices = @transform_1, window_bounds = array<i64: 32, 96>}, {transform_indices = @transform_2, window_bounds = array<i64: 1, 96>}, {transform_indices = @transform_3, window_bounds = array<i64: 8, 96>}]} {
    %c0 = arith.constant 0 : index
    %c0_0 = arith.constant 0 : index
    %0 = vector.load %arg2[%c0, %c0_0] : memref<8x32xf32, #tpu.memory_space<vmem>>, vector<8x32xf32>
    %cst = arith.constant dense<0.000000e+00> : vector<8xf32>
    %1 = vector.multi_reduction <add>, %0, %cst [1] : vector<8x32xf32> to vector<8xf32>
    %2 = vector.shape_cast %1 : vector<8xf32> to vector<8x1xf32>
    %cst_1 = arith.constant 3.200000e+01 : f32
    %3 = vector.broadcast %cst_1 : f32 to vector<8x1xf32>
    %4 = arith.divf %2, %3 : vector<8x1xf32>
    %5 = vector.broadcast %4 : vector<8x1xf32> to vector<8x32xf32>
    %6 = arith.subf %0, %5 : vector<8x32xf32>
    %7 = arith.mulf %6, %6 : vector<8x32xf32>
    %cst_2 = arith.constant dense<0.000000e+00> : vector<8xf32>
    %8 = vector.multi_reduction <add>, %7, %cst_2 [1] : vector<8x32xf32> to vector<8xf32>
    %9 = vector.shape_cast %8 : vector<8xf32> to vector<8x1xf32>
    %cst_3 = arith.constant 3.200000e+01 : f32
    %10 = vector.broadcast %cst_3 : f32 to vector<8x1xf32>
    %11 = arith.divf %9, %10 : vector<8x1xf32>
    %12 = vector.broadcast %4 : vector<8x1xf32> to vector<8x32xf32>
    %13 = arith.subf %0, %12 : vector<8x32xf32>
    %cst_4 = arith.constant 9.99999974E-6 : f32
    %14 = vector.broadcast %cst_4 : f32 to vector<8x1xf32>
    %15 = arith.addf %11, %14 : vector<8x1xf32>
    %16 = math.rsqrt %15 : vector<8x1xf32>
    %17 = vector.broadcast %16 : vector<8x1xf32> to vector<8x32xf32>
    %18 = arith.mulf %13, %17 : vector<8x32xf32>
    %19 = arith.truncf %18 : vector<8x32xf32> to vector<8x32xbf16>
    %c0_5 = arith.constant 0 : index
    %c0_6 = arith.constant 0 : index
    %20 = vector.load %arg3[%c0_5, %c0_6] : memref<32x96xbf16, #tpu.memory_space<vmem>>, vector<32x96xbf16>
    %cst_7 = arith.constant dense<0.000000e+00> : vector<8x96xf32>
    %21 = tpu.matmul %19, %20, %cst_7 {dimension_numbers = #tpu.dot_dimension_numbers<[1], [0], [0], [1], [0, 0, 1, 1], [], []>} : vector<8x32xbf16>, vector<32x96xbf16>, vector<8x96xf32> -> vector<8x96xf32>
    %c0_8 = arith.constant 0 : index
    %c0_9 = arith.constant 0 : index
    %22 = vector.load %arg4[%c0_8, %c0_9] : memref<1x96xf32, #tpu.memory_space<vmem>>, vector<1x96xf32>
    %23 = vector.broadcast %22 : vector<1x96xf32> to vector<8x96xf32>
    %24 = arith.addf %21, %23 : vector<8x96xf32>
    %c0_10 = arith.constant 0 : index
    %c0_11 = arith.constant 0 : index
    %25 = vector.load %arg5[%c0_10, %c0_11] : memref<8x96xf32, #tpu.memory_space<vmem>>, vector<8x96xf32>
    tpu.vector_store %arg5[%c0_10, %c0_11], %24 {strides = array<i32>} : memref<8x96xf32, #tpu.memory_space<vmem>>, vector<8x96xf32>,
    return
  }
  func.func @transform_0(%arg0: i32, %arg1: i32) -> (i32, i32) {
    %c0_i32 = arith.constant 0 : i32
    %c0_i32_0 = arith.constant 0 : i32
    return %arg0, %c0_i32 : i32, i32
  }
  func.func @transform_1(%arg0: i32, %arg1: i32) -> (i32, i32) {
    %c0_i32 = arith.constant 0 : i32
    %c0_i32_0 = arith.constant 0 : i32
    return %c0_i32, %arg1 : i32, i32
  }
  func.func @transform_2(%arg0: i32, %arg1: i32) -> (i32, i32) {
    %c0_i32 = arith.constant 0 : i32
    %c0_i32_0 = arith.constant 0 : i32
    return %c0_i32, %arg1 : i32, i32
  }
  func.func @transform_3(%arg0: i32, %arg1: i32) -> (i32, i32) {
    %c0_i32 = arith.constant 0 : i32
    return %arg0, %arg1 : i32, i32
  }
}

</mosaic_0001>

<llo_original>
// kernel: tpu_custom_call.1
$region0: #{tpu_custom_call.1}
  #allocation0 [shape = 'u32[]', space=smem, size = 0x4, offset = 0x4, fixed_abs, tag = 'smem constant byte address 0x4 - core index']
  #allocation1 [shape = 'u32[144,128]{1,0:T(1,128)}', space=vmem, size = 0x12000, scoped, tag = 'internal scratch']
  %s0 = inlined_call_operand.hbm [shape: f32[16,32], index: 0, kind: input, shape index: {}]
  %s1 = inlined_call_operand.hbm [shape: bf16[32,96], index: 1, kind: input, shape index: {}]
  %s2 = inlined_call_operand.vmem [shape: f32[1,96], index: 2, kind: input, shape index: {}]
  %s3 = inlined_call_operand.hbm [shape: f32[16,96], index: 3, kind: output, shape index: {}]
  %s4 = sld [smem:[#allocation0]]
  $region53: #{tpu_custom_call.1} parent=0
    _
  %s6 = ssub.s32 1, %s4
  %s7 = scalar_select 0, %s6, %s4
  $region1: #{tpu_custom_call.1} parent=0
    #allocation2 [shape = 'u8[8192]{0}', space=vmem, size = 0x2000, scoped, tag = 'input window, operand 0']
    #allocation3 [shape = 's32[2]{0}', space=sflag, size = 0x8, scoped, tag = 'scoped memory for tpu_custom_call.1']
    #allocation4 [shape = 's32[2]{0}', space=sflag, size = 0x8, scoped, tag = 'scoped memory for tpu_custom_call.1']
    #allocation5 [shape = 'u8[8192]{0}', space=vmem, size = 0x2000, scoped, tag = 'input window, operand 1, single buffered']
    #allocation6 [shape = 's32[1]{0}', space=sflag, size = 0x4, scoped, tag = 'scoped memory for tpu_custom_call.1']
    #allocation7 [shape = 'u8[8192]{0}', space=vmem, size = 0x2000, scoped, tag = 'output window, operand 0']
    %8 = vsyncpa [#allocation3], 0
    %s9 = scalar_lea.sflag [#allocation3], 1
    %10 = vsyncpa %s9, 0
    %11 = vsyncpa [#allocation6], 0
    %12 = vsyncpa [#allocation4], 0
    %s13 = scalar_lea.sflag [#allocation4], 1
    %14 = vsyncpa %s13, 0
    loop: start=0, step=1, limit=4
    $region2: #{tpu_custom_call.1} parent=1 // loop_pre_header
      _
    $region3: #{tpu_custom_call.1} parent=1 // loop_header
      %s16 = sphi 0, %s20
      %p17 = scmp.ge.s32.totalorder %s16, 4
      %s23 = sphi 0, %s35
      %s24 = sphi 0, %s31
      %s25 = sphi 0, %s23
      %s26 = sphi 0, %s24
      %s27 = sphi 0, %s25
      %s28 = sphi 0, %s26
      %s38 = sphi 0, %s40
      %s41 = sphi 0, %s38
      %s42 = sphi 0, %s41
      %s58 = sphi 0, %s42
      %s64 = sphi 0, %s66
      %s67 = sphi 0, %s64
      %s68 = sphi 0, %s67
      %s84 = sphi 0, %s68
      %s90 = sphi 0, %s92
      %s93 = sphi 0, %s90
      %s94 = sphi 0, %s93
      %s110 = sphi 0, %s94
      %s118 = sphi 0, %s120
      %s121 = sphi 0, %s118
      %s122 = sphi 0, %s121
      %s138 = sphi 0, %s122
    $region4: #{tpu_custom_call.1} parent=1 // loop_header_branch
      %19 = sbr.rel (%p17) target = $region8
    $region5: #{tpu_custom_call.1} parent=1 // loop_body
      %s21 = ssub.s32 %s16, 1
      %s22 = ssub.s32 %s16, 2
      %s29 = sadd.s32 1, %s24
      %p30 = scmp.ge.s32.totalorder %s29, 1
      %s31 = scalar_select %p30, 0, %s29
      %s32 = sadd.s32 1, %s23
      %s33 = scalar_select %p30, %s32, %s23
      %p34 = scmp.ge.s32.totalorder %s33, 2
      %s35 = scalar_select %p34, 0, %s33
      %s36 = ssub.s32 %s23, %s35
      %p37 = scmp.eq.s32.totalorder %s36, 0
      %s39 = sadd.s32 %s38, 1
      %s40 = scalar_select %p37, %s38, %s39
      %p43 = pneg %p37
      %p44 = scmp.eq.s32.totalorder %s16, 1
      %p45 = por %p43, %p44
      %p46 = scmp.ne.s32.totalorder %s38, %s41
      %p47 = scmp.eq.s32.totalorder %s16, 0
      %p48 = por %p46, %p47
      %p49 = scmp.ne.s32.totalorder %s38, %s41
      %p50 = scmp.eq.s32.totalorder %s21, 1
      %p51 = por %p49, %p50
      %p52 = scmp.ne.s32.totalorder %s41, %s42
      %p53 = scmp.eq.s32.totalorder %s21, 0
      %p54 = por %p52, %p53
      %p55 = scmp.ne.s32.totalorder %s41, %s42
      %p56 = scmp.eq.s32.totalorder %s22, 1
      %p57 = por %p55, %p56
      %p59 = scmp.ne.s32.totalorder %s42, %s58
      %p60 = scmp.eq.s32.totalorder %s22, 0
      %p61 = por %p59, %p60
      %s62 = ssub.s32 %s24, %s31
      %p63 = scmp.eq.s32.totalorder %s62, 0
      %s65 = sadd.s32 %s64, 1
      %s66 = scalar_select %p63, %s64, %s65
      %p69 = pneg %p63
      %p70 = scmp.eq.s32.totalorder %s16, 1
      %p71 = por %p69, %p70
      %p72 = scmp.ne.s32.totalorder %s64, %s67
      %p73 = scmp.eq.s32.totalorder %s16, 0
      %p74 = por %p72, %p73
      %p75 = scmp.ne.s32.totalorder %s64, %s67
      %p76 = scmp.eq.s32.totalorder %s21, 1
      %p77 = por %p75, %p76
      %p78 = scmp.ne.s32.totalorder %s67, %s68
      %p79 = scmp.eq.s32.totalorder %s21, 0
      %p80 = por %p78, %p79
      %p81 = scmp.ne.s32.totalorder %s67, %s68
      %p82 = scmp.eq.s32.totalorder %s22, 1
      %p83 = por %p81, %p82
      %p85 = scmp.ne.s32.totalorder %s68, %s84
      %p86 = scmp.eq.s32.totalorder %s22, 0
      %p87 = por %p85, %p86
      %s88 = ssub.s32 %s24, %s31
      %p89 = scmp.eq.s32.totalorder %s88, 0
      %s91 = sadd.s32 %s90, 1
      %s92 = scalar_select %p89, %s90, %s91
      %p95 = pneg %p89
      %p96 = scmp.eq.s32.totalorder %s16, 1
      %p97 = por %p95, %p96
      %p98 = scmp.ne.s32.totalorder %s90, %s93
      %p99 = scmp.eq.s32.totalorder %s16, 0
      %p100 = por %p98, %p99
      %p101 = scmp.ne.s32.totalorder %s90, %s93
      %p102 = scmp.eq.s32.totalorder %s21, 1
      %p103 = por %p101, %p102
      %p104 = scmp.ne.s32.totalorder %s93, %s94
      %p105 = scmp.eq.s32.totalorder %s21, 0
      %p106 = por %p104, %p105
      %p107 = scmp.ne.s32.totalorder %s93, %s94
      %p108 = scmp.eq.s32.totalorder %s22, 1
      %p109 = por %p107, %p108
      %p111 = scmp.ne.s32.totalorder %s94, %s110
      %p112 = scmp.eq.s32.totalorder %s22, 0
      %p113 = por %p111, %p112
      %s114 = ssub.s32 %s23, %s35
      %s115 = ssub.s32 %s24, %s31
      %s116 = sor.u32 %s114, %s115
      %p117 = scmp.eq.s32.totalorder %s116, 0
      %s119 = sadd.s32 %s118, 1
      %s120 = scalar_select %p117, %s118, %s119
      %p123 = pneg %p117
      %p124 = scmp.eq.s32.totalorder %s16, 1
      %p125 = por %p123, %p124
      %p126 = scmp.ne.s32.totalorder %s118, %s121
      %p127 = scmp.eq.s32.totalorder %s16, 0
      %p128 = por %p126, %p127
      %p129 = scmp.ne.s32.totalorder %s118, %s121
      %p130 = scmp.eq.s32.totalorder %s21, 1
      %p131 = por %p129, %p130
      %p132 = scmp.ne.s32.totalorder %s121, %s122
      %p133 = scmp.eq.s32.totalorder %s21, 0
      %p134 = por %p132, %p133
      %p135 = scmp.ne.s32.totalorder %s121, %s122
      %p136 = scmp.eq.s32.totalorder %s22, 1
      %p137 = por %p135, %p136
      %p139 = scmp.ne.s32.totalorder %s122, %s138
      %p140 = scmp.eq.s32.totalorder %s22, 0
      %p141 = por %p139, %p140
      %p142 = scmp.le.s32.totalorder 1, %s16
      %p143 = scmp.lt.s32.totalorder %s16, 3
      %p144 = pnand %p142, %p143
      %p145 = pneg %p144
      // Predicated region
      $region9: #{tpu_custom_call.1} parent=5 // pred_check
        _
      $region10: #{tpu_custom_call.1} parent=5 // pred_check_branch
        %147 = sbr.rel (%p144) target = $region12
      $region11: #{tpu_custom_call.1} parent=5 // pred_region
        %s148 = ssub.s32 %s16, 1
        // Predicated region
        $region13: #{tpu_custom_call.1} parent=11 // pred_check
          %p149 = pneg %p80
        $region14: #{tpu_custom_call.1} parent=11 // pred_check_branch
          %151 = sbr.rel (%p149) target = $region16
        $region15: #{tpu_custom_call.1} parent=11 // pred_region
          %s153 = ssub.s32 256, 256
          %154 = vsyncadd [#allocation6], %s153
          %s155 = smul.addr %s26, 64
          %s156 = scalar_lea.hbm %s1, %s155
          %s157 = sshll.u32 [#allocation5], 4
          %s158 = int_to_ptr.vmem [resolvable:$true] %s157
          %163 = dma.hbm_to_vmem [thread:$0]  %s156, 256, %s158, [#allocation6], 64, 64, 4
        $region16: #{tpu_custom_call.1} parent=11 // pred_fallthru
          _
        // Predicated region
        $region17: #{tpu_custom_call.1} parent=11 // pred_check
          %p164 = pneg %p106
        $region18: #{tpu_custom_call.1} parent=11 // pred_check_branch
          %166 = sbr.rel (%p164) target = $region20
        $region19: #{tpu_custom_call.1} parent=11 // pred_region
          %p167 = scmp.lt.s32.totalorder %s26, 0
          %s168 = scalar_select %p167, %s26, 0
          %s169 = scalar_lea.vmem %s2, %s168
        $region20: #{tpu_custom_call.1} parent=11 // pred_fallthru
          _
      $region12: #{tpu_custom_call.1} parent=5 // pred_fallthru
        _
      %p170 = scmp.lt.s32.totalorder %s16, 2
      // Predicated region
      $region21: #{tpu_custom_call.1} parent=5 // pred_check
        %p171 = pneg %p170
      $region22: #{tpu_custom_call.1} parent=5 // pred_check_branch
        %173 = sbr.rel (%p171) target = $region24
      $region23: #{tpu_custom_call.1} parent=5 // pred_region
        // Predicated region
        $region25: #{tpu_custom_call.1} parent=23 // pred_check
          %p174 = pneg %p48
        $region26: #{tpu_custom_call.1} parent=23 // pred_check_branch
          %176 = sbr.rel (%p174) target = $region28
        $region27: #{tpu_custom_call.1} parent=23 // pred_region
          %s177 = sand.u32 %s38, 1
          %s178 = scalar_lea.sflag [#allocation3], %s177
          %s179 = sand.u32 %s38, 1
          %s180 = smul.addr %s179, 8
          %s181 = scalar_lea.vmem [#allocation2], %s180
          %s183 = ssub.s32 128, 128
          %184 = vsyncadd %s178, %s183
          %s185 = smul.addr %s23, 128
          %s186 = scalar_lea.hbm %s0, %s185
          %s188 = sshll.u32 %s181, 4
          %s189 = int_to_ptr.vmem [resolvable:$true] %s188
          %191 = dma.hbm_to_vmem [thread:$0]  %s186, 128, %s189, %s178
        $region28: #{tpu_custom_call.1} parent=23 // pred_fallthru
          _
      $region24: #{tpu_custom_call.1} parent=5 // pred_fallthru
        _
      %p192 = scmp.le.s32.totalorder 1, %s16
      %p193 = scmp.lt.s32.totalorder %s16, 3
      %p194 = pnand %p192, %p193
      %p195 = pneg %p194
      // Predicated region
      $region29: #{tpu_custom_call.1} parent=5 // pred_check
        _
      $region30: #{tpu_custom_call.1} parent=5 // pred_check_branch
        %197 = sbr.rel (%p194) target = $region32
      $region31: #{tpu_custom_call.1} parent=5 // pred_region
        %s198 = ssub.s32 %s16, 1
        %s199 = sand.u32 %s41, 1
        %s200 = scalar_lea.sflag [#allocation3], %s199
        %s201 = sand.u32 %s41, 1
        %s202 = smul.addr %s201, 8
        %s203 = scalar_lea.vmem [#allocation2], %s202
        // Predicated region
        $region33: #{tpu_custom_call.1} parent=31 // pred_check
          %p204 = pneg %p54
        $region34: #{tpu_custom_call.1} parent=31 // pred_check_branch
          %206 = sbr.rel (%p204) target = $region36
        $region35: #{tpu_custom_call.1} parent=31 // pred_region
          %207 = dma.done %s200, 128
        $region36: #{tpu_custom_call.1} parent=31 // pred_fallthru
          _
        // Predicated region
        $region37: #{tpu_custom_call.1} parent=31 // pred_check
          %p208 = pneg %p80
        $region38: #{tpu_custom_call.1} parent=31 // pred_check_branch
          %210 = sbr.rel (%p208) target = $region40
        $region39: #{tpu_custom_call.1} parent=31 // pred_region
          %211 = dma.done [#allocation6], 256
        $region40: #{tpu_custom_call.1} parent=31 // pred_fallthru
          _
        %s212 = sand.u32 %s41, 1
        %s213 = scalar_lea.sflag [#allocation3], %s212
        %s214 = sand.u32 %s41, 1
        %s215 = smul.addr %s214, 8
        %s216 = scalar_lea.vmem [#allocation2], %s215
        %p217 = pneg %p54
        %p218 = pneg %p51
        %p219 = pneg %p80
        %p220 = pneg %p77
        %p221 = scmp.lt.s32.totalorder %s26, 0
        %s222 = scalar_select %p221, %s26, 0
        %s223 = scalar_lea.vmem %s2, %s222
        %p224 = pneg %p106
        %p225 = pneg %p103
        %p226 = pneg %p134
        %p227 = pneg %p131
        %s228 = sand.u32 %s121, 1
        %s229 = scalar_lea.sflag [#allocation4], %s228
        %s230 = sand.u32 %s121, 1
        %s231 = smul.addr %s230, 8
        %s232 = scalar_lea.vmem [#allocation7], %s231
        %p233 = scmp.lt.s32.totalorder %s26, 0
        %s234 = scalar_select %p233, %s26, 0
        %s235 = scalar_lea.vmem %s2, %s234
        %v237 = vld [vmem:[%s203] sm:$0xff]
        %vm238 = vcmask 261120
        %v239 = vsel %vm238, %v237, 0.0
        %240 = vadd.xlane.f32.xlu0 %v239
        %v241 = vpop.xlane.xlu0 %240
        %v242 = vrcp.pop 32.0
        %v243 = vmul.f32 %v241, %v242
        %v244 = vsub.f32 %v237, %v243
        %v245 = vmul.f32 %v244, %v244
        %v246 = vsel %vm238, %v245, 0.0
        %247 = vadd.xlane.f32.xlu0 %v246
        %v248 = vpop.xlane.xlu0 %247
        %v249 = vmul.f32 %v248, %v242
        %v250 = vadd.f32 %v249, 1e-05
        %v251 = vrsqrt.pop %v250
        %v252 = vmul.f32 %v244, %v251
        %v253 = vpack.c.bf16 %v252, %v252
        %v254 = vld [vmem:[#allocation5] sm:$0xf]
        %v255 = vld [vmem:[#allocation5 + $0x4] sm:$0xf]
        %v256 = vld [vmem:[#allocation5 + $0x8] sm:$0xf]
        %v257 = vld [vmem:[#allocation5 + $0xc] sm:$0xf]
        %v258 = vld [vmem:[%s235] sm:$0x1]
        %v260 = vlaneseq
        %v261 = vshrl.u32 %v260, 7
        %v262 = vsub.s32 0, %v261
        %v263 = vrot.slane %v258, %v262
        %v269 = vunpack.c.l.b16 %v254
        %v270 = vunpack.c.l.b16 %v255
        %v271 = vunpack.c.l.b16 %v256
        %v272 = vunpack.c.l.b16 %v257
        %v273 = vpack.c.b16 %v270, %v269
        %v274 = vpack.c.b16 %v272, %v271
        %v278 = vsel %vm238, %v253, 0
        %280 = vmatprep.subr.bf16.mxu0 0
        %281 = vmatpush1.bf16.msra.mxu0 %v273
        %282 = vmatprep.subr.bf16.mxu0 0
        %283 = vmatpush1.bf16.msra.mxu0 %v274
        %284 = vmatprep.subr.bf16.mxu0 0
        %285 = vmatpush1.bf16.msra.mxu0 0
        %286 = vmatprep.subr.bf16.mxu0 0
        %287 = vmatpush1.bf16.msra.mxu0 0
        %288 = vmatprep.subr.bf16.mxu0 0
        %289 = vmatpush1.bf16.msra.mxu0 0
        %290 = vmatprep.subr.bf16.mxu0 0
        %291 = vmatpush1.bf16.msra.mxu0 0
        %292 = vmatprep.subr.bf16.mxu0 0
        %293 = vmatpush1.bf16.msra.mxu0 0
        %294 = vmatprep.subr.bf16.mxu0 0
        %295 = vmatpush1.bf16.msra.mxu0 0
        %296 = vmatprep.subr.bf16.mxu0 0
        %297 = vmatpush1.bf16.msra.mxu0 0
        %298 = vmatprep.subr.bf16.mxu0 0
        %299 = vmatpush1.bf16.msra.mxu0 0
        %300 = vmatprep.subr.bf16.mxu0 0
        %301 = vmatpush1.bf16.msra.mxu0 0
        %302 = vmatprep.subr.bf16.mxu0 0
        %303 = vmatpush1.bf16.msra.mxu0 0
        %304 = vmatprep.subr.bf16.mxu0 0
        %305 = vmatpush1.bf16.msra.mxu0 0
        %306 = vmatprep.subr.bf16.mxu0 0
        %307 = vmatpush1.bf16.msra.mxu0 0
        %308 = vmatprep.subr.bf16.mxu0 0
        %309 = vmatpush1.bf16.msra.mxu0 0
        %310 = vmatprep.subr.bf16.mxu0 0
        %311 = vmatpush1.bf16.msra.mxu0 0
        %312 = vmatprep.mubr.bf16.mxu0 0
        %313 = vmatmul.mubr.bf16.gmra.mrb[0].mxu0 %v278
        %v314 = vpop.f32.mrb[0].mxu0
        %v315 = vadd.f32 %v263, %v314
        %v316 = vpop.f32.mrb[0].mxu0
        %v317 = vpop.f32.mrb[0].mxu0
        %v318 = vpop.f32.mrb[0].mxu0
        %319 = vdwg.mxu0
        %vm320 = vcmask 785408
        %321 = vst.msk [vmem:[%s232] sm:$0xff] %vm320, %v315
        %s322 = sand.u32 %s121, 1
        %s323 = scalar_lea.sflag [#allocation4], %s322
        %s324 = sand.u32 %s121, 1
        %s325 = smul.addr %s324, 8
        %s326 = scalar_lea.vmem [#allocation7], %s325
        // Predicated region
        $region41: #{tpu_custom_call.1} parent=31 // pred_check
          %p327 = pneg %p131
        $region42: #{tpu_custom_call.1} parent=31 // pred_check_branch
          %329 = sbr.rel (%p327) target = $region44
        $region43: #{tpu_custom_call.1} parent=31 // pred_region
          %s331 = ssub.s32 128, 128
          %332 = vsyncadd %s323, %s331
          %s333 = sadd.s32 %s26, %s25
          %s334 = smul.addr %s333, 128
          %s335 = scalar_lea.hbm %s3, %s334
          %s337 = sshll.u32 %s326, 4
          %s338 = int_to_ptr.vmem [resolvable:$true] %s337
          %340 = dma.vmem_to_hbm [thread:$0]  %s338, 128, %s335, %s323
        $region44: #{tpu_custom_call.1} parent=31 // pred_fallthru
          _
      $region32: #{tpu_custom_call.1} parent=5 // pred_fallthru
        _
      %p341 = scmp.le.s32.totalorder 2, %s16
      // Predicated region
      $region45: #{tpu_custom_call.1} parent=5 // pred_check
        %p342 = pneg %p341
      $region46: #{tpu_custom_call.1} parent=5 // pred_check_branch
        %344 = sbr.rel (%p342) target = $region48
      $region47: #{tpu_custom_call.1} parent=5 // pred_region
        %s345 = ssub.s32 %s16, 2
        // Predicated region
        $region49: #{tpu_custom_call.1} parent=47 // pred_check
          %p346 = pneg %p137
        $region50: #{tpu_custom_call.1} parent=47 // pred_check_branch
          %348 = sbr.rel (%p346) target = $region52
        $region51: #{tpu_custom_call.1} parent=47 // pred_region
          %s349 = sand.u32 %s122, 1
          %s350 = scalar_lea.sflag [#allocation4], %s349
          %s351 = sand.u32 %s122, 1
          %s352 = smul.addr %s351, 8
          %s353 = scalar_lea.vmem [#allocation7], %s352
          %354 = dma.done %s350, 128
        $region52: #{tpu_custom_call.1} parent=47 // pred_fallthru
          _
      $region48: #{tpu_custom_call.1} parent=5 // pred_fallthru
        _
    $region6: #{tpu_custom_call.1} parent=1 // loop_footer
      %s20 = sadd.s32 1, %s16
    $region7: #{tpu_custom_call.1} parent=1 // loop_footer_branch
      %15 = sbr.rel target = $region3
    $region8: #{tpu_custom_call.1} parent=1 // loop_exit
      _
    %355 = vsyncpa [#allocation3], 1
    %s356 = scalar_lea.sflag [#allocation3], 1
    %357 = vsyncpa %s356, 1
    %358 = vsyncpa [#allocation6], 1
    %359 = vsyncpa [#allocation4], 1
    %s360 = scalar_lea.sflag [#allocation4], 1
    %361 = vsyncpa %s360, 1

</llo_original>
